<compile_context>
chip_gen: v6e
topology: v6e:2x2x1
jax: 0.10.0
libtpu: 0.0.40
codegen_flags: <defaults>
</compile_context>

<pallas_src>
import functools

import jax
import jax.numpy as jnp
from jax.experimental import pallas as pl
from jax.experimental.pallas import tpu as pltpu


def _concaten_kernel(x_ref, xbr_ref, w1_ref, b1_ref, w2_ref, b2_ref, o_ref, *, co):
    # x_ref, xbr_ref : (C, TS)     channels on sublanes, spatial on lanes
    # w1_ref, w2_ref : (Co, C)     1x1-conv weights (VMEM-resident across grid)
    # b1_ref, b2_ref : (Co, 1)
    # o_ref          : (2*Co, TS)  channel-concatenated output tile
    y1 = jnp.dot(w1_ref[...], x_ref[...], preferred_element_type=jnp.float32)
    o_ref[:co, :] = (y1 + b1_ref[...]).astype(o_ref.dtype)     # branch 1 -> top half
    y2 = jnp.dot(w2_ref[...], xbr_ref[...], preferred_element_type=jnp.float32)
    o_ref[co:, :] = (y2 + b2_ref[...]).astype(o_ref.dtype)     # branch 2 -> bottom half


def concaten_forward(x, x_br, w1, b1, w2, b2, *, tile_s=1024):
    """x, x_br: (N, C, H, W).  w1, w2: (Co, C); b1, b2: (Co,).

    Equivalent to torch: cat([Conv2d_1x1(x; w1,b1), Conv2d_1x1(x_br; w2,b2)], dim=1).
    Keeps NCHW end-to-end (reshape to (N, C, H*W) is a free view), so no HBM
    transpose passes.  Spatial tiles default to 1024 lanes to amortize per-step
    pipeline overhead; weights/biases use constant index_maps so they stay
    resident in VMEM across the whole grid.
    """
    N, C, H, W = x.shape
    Co = w1.shape[0]
    S = H * W

    x_rows = x.reshape(N, C, S)            # free: contiguous NCHW view
    xbr_rows = x_br.reshape(N, C, S)
    b1_col = b1.reshape(Co, 1)
    b2_col = b2.reshape(Co, 1)

    # Spatial tile: full extent if small, otherwise a multiple of 128 lanes.
    if S <= tile_s:
        ts = S
    else:
        ts = max(128, (tile_s // 128) * 128)
    grid = (N, pl.cdiv(S, ts))

    kernel = functools.partial(_concaten_kernel, co=Co)

    # VMEM per step (double-buffered inputs/output + resident weights) is tiny
    # for these shapes, so the default scoped VMEM limit is sufficient on
    # v5e/v6e (128 MiB phys) and v7x (64 MiB phys); raise vmem_limit_bytes in
    # CompilerParams only if tile_s * C grows very large.
    out = pl.pallas_call(
        kernel,
        out_shape=jax.ShapeDtypeStruct((N, 2 * Co, S), x.dtype),
        grid_spec=pltpu.PrefetchScalarGridSpec(
            num_scalar_prefetch=0,
            grid=grid,
            in_specs=[
                pl.BlockSpec((None, C, ts), lambda n, s: (n, 0, s)),   # x tile
                pl.BlockSpec((None, C, ts), lambda n, s: (n, 0, s)),   # x_br tile
                pl.BlockSpec((Co, C), lambda n, s: (0, 0)),            # w1 (resident)
                pl.BlockSpec((Co, 1), lambda n, s: (0, 0)),            # b1
                pl.BlockSpec((Co, C), lambda n, s: (0, 0)),            # w2 (resident)
                pl.BlockSpec((Co, 1), lambda n, s: (0, 0)),            # b2
            ],
            out_specs=pl.BlockSpec((None, 2 * Co, ts), lambda n, s: (n, 0, s)),
        ),
        compiler_params=pltpu.CompilerParams(
            # Both grid axes are independent rows of work -> megacore-shardable
            # on v7x; no-op on single-TC v5e/v6e.
            dimension_semantics=("parallel", "parallel")),
    )(x_rows, xbr_rows, w1, b1_col, w2, b2_col)

    return out.reshape(N, 2 * Co, H, W)


def _reference(x, x_br, w1, b1, w2, b2):
    # pure-JAX reference of the torch forward (1x1 convs + channel concat)
    y1 = jnp.einsum("nchw,oc->nohw", x, w1) + b1[None, :, None, None]
    y2 = jnp.einsum("nchw,oc->nohw", x_br, w2) + b2[None, :, None, None]
    return jnp.concatenate([y1, y2], axis=1)


def _run_case(key, N, in_c, H, W, tile_s):
    k_x, k_xbr, k_w1, k_b1, k_w2, k_b2 = jax.random.split(key, 6)
    out_c = in_c // 2
    x = jax.random.normal(k_x, (N, in_c, H, W), dtype=jnp.float32)
    x_br = jax.random.normal(k_xbr, (N, in_c, H, W), dtype=jnp.float32)
    w1 = jax.random.normal(k_w1, (out_c, in_c), dtype=jnp.float32) * 0.1
    b1 = jax.random.normal(k_b1, (out_c,), dtype=jnp.float32) * 0.1
    w2 = jax.random.normal(k_w2, (out_c, in_c), dtype=jnp.float32) * 0.1
    b2 = jax.random.normal(k_b2, (out_c,), dtype=jnp.float32) * 0.1

    out = jax.block_until_ready(
        concaten_forward(x, x_br, w1, b1, w2, b2, tile_s=tile_s))
    ref = _reference(x, x_br, w1, b1, w2, b2)
    assert out.shape == (N, in_c, H, W), out.shape
    assert jnp.allclose(out, ref, atol=1e-5, rtol=1e-5), "mismatch vs reference"


if __name__ == "__main__":
    key = jax.random.PRNGKey(0)
    k0, k1 = jax.random.split(key, 2)

    # Module-spec shape: batch=2, in_c=4, 16x16 spatial (single spatial tile).
    _run_case(k0, N=2, in_c=4, H=16, W=16, tile_s=1024)

    # Larger case exercising the multi-tile spatial grid (S=1024, ts=512).
    _run_case(k1, N=2, in_c=8, H=32, W=32, tile_s=512)

    print("KERNEL_OK")
</pallas_src>

<mosaic_0001>
module attributes {stable_mosaic.version = 11 : i64} {
  func.func @_concaten_kernel(%arg0: i32, %arg1: i32, %arg2: memref<1x4x256xf32, #tpu.memory_space<vmem>>, %arg3: memref<1x4x256xf32, #tpu.memory_space<vmem>>, %arg4: memref<2x4xf32, #tpu.memory_space<vmem>>, %arg5: memref<2x1xf32, #tpu.memory_space<vmem>>, %arg6: memref<2x4xf32, #tpu.memory_space<vmem>>, %arg7: memref<2x1xf32, #tpu.memory_space<vmem>>, %arg8: memref<1x4x256xf32, #tpu.memory_space<vmem>>) attributes {dimension_semantics = [#tpu.dimension_semantics<parallel>, #tpu.dimension_semantics<parallel>], iteration_bounds = array<i64: 2, 1>, scalar_prefetch = 0 : i64, scratch_operands = 0 : i64, tpu.core_type = #tpu.core_type<tc>, window_params = [{transform_indices = @transform_0, window_bounds = array<i64: 1, 4, 256>}, {transform_indices = @transform_1, window_bounds = array<i64: 1, 4, 256>}, {pipeline_mode = #tpu.pipeline_mode<synchronous>, transform_indices = @transform_2, window_bounds = array<i64: 2, 4>}, {pipeline_mode = #tpu.pipeline_mode<synchronous>, transform_indices = @transform_3, window_bounds = array<i64: 2, 1>}, {pipeline_mode = #tpu.pipeline_mode<synchronous>, transform_indices = @transform_4, window_bounds = array<i64: 2, 4>}, {pipeline_mode = #tpu.pipeline_mode<synchronous>, transform_indices = @transform_5, window_bounds = array<i64: 2, 1>}, {transform_indices = @transform_6, window_bounds = array<i64: 1, 4, 256>}]} {
    %c0 = arith.constant 0 : index
    %c0_0 = arith.constant 0 : index
    %0 = vector.load %arg4[%c0, %c0_0] : memref<2x4xf32, #tpu.memory_space<vmem>>, vector<2x4xf32>
    %c0_1 = arith.constant 0 : index
    %c0_2 = arith.constant 0 : index
    %c0_3 = arith.constant 0 : index
    %1 = vector.load %arg2[%c0_1, %c0_2, %c0_3] : memref<1x4x256xf32, #tpu.memory_space<vmem>>, vector<1x4x256xf32>
    %2 = vector.shape_cast %1 : vector<1x4x256xf32> to vector<4x256xf32>
    %cst = arith.constant dense<0.000000e+00> : vector<2x256xf32>
    %3 = tpu.matmul %0, %2, %cst {dimension_numbers = #tpu.dot_dimension_numbers<[1], [0], [0], [1], [0, 0, 1, 1], [], []>} : vector<2x4xf32>, vector<4x256xf32>, vector<2x256xf32> -> vector<2x256xf32>
    %c0_4 = arith.constant 0 : index
    %c0_5 = arith.constant 0 : index
    %4 = vector.load %arg5[%c0_4, %c0_5] : memref<2x1xf32, #tpu.memory_space<vmem>>, vector<2x1xf32>
    %5 = vector.broadcast %4 : vector<2x1xf32> to vector<2x256xf32>
    %6 = arith.addf %3, %5 : vector<2x256xf32>
    %c0_6 = arith.constant 0 : index
    %c0_7 = arith.constant 0 : index
    %c0_8 = arith.constant 0 : index
    %7 = vector.load %arg8[%c0_6, %c0_7, %c0_8] : memref<1x4x256xf32, #tpu.memory_space<vmem>>, vector<1x2x256xf32>
    %8 = vector.shape_cast %7 : vector<1x2x256xf32> to vector<2x256xf32>
    %9 = vector.shape_cast %6 : vector<2x256xf32> to vector<1x2x256xf32>
    tpu.vector_store %arg8[%c0_6, %c0_7, %c0_8], %9 {strides = array<i32>} : memref<1x4x256xf32, #tpu.memory_space<vmem>>, vector<1x2x256xf32>,
    %c0_9 = arith.constant 0 : index
    %c0_10 = arith.constant 0 : index
    %10 = vector.load %arg6[%c0_9, %c0_10] : memref<2x4xf32, #tpu.memory_space<vmem>>, vector<2x4xf32>
    %c0_11 = arith.constant 0 : index
    %c0_12 = arith.constant 0 : index
    %c0_13 = arith.constant 0 : index
    %11 = vector.load %arg3[%c0_11, %c0_12, %c0_13] : memref<1x4x256xf32, #tpu.memory_space<vmem>>, vector<1x4x256xf32>
    %12 = vector.shape_cast %11 : vector<1x4x256xf32> to vector<4x256xf32>
    %cst_14 = arith.constant dense<0.000000e+00> : vector<2x256xf32>
    %13 = tpu.matmul %10, %12, %cst_14 {dimension_numbers = #tpu.dot_dimension_numbers<[1], [0], [0], [1], [0, 0, 1, 1], [], []>} : vector<2x4xf32>, vector<4x256xf32>, vector<2x256xf32> -> vector<2x256xf32>
    %c0_15 = arith.constant 0 : index
    %c0_16 = arith.constant 0 : index
    %14 = vector.load %arg7[%c0_15, %c0_16] : memref<2x1xf32, #tpu.memory_space<vmem>>, vector<2x1xf32>
    %15 = vector.broadcast %14 : vector<2x1xf32> to vector<2x256xf32>
    %16 = arith.addf %13, %15 : vector<2x256xf32>
    %c0_17 = arith.constant 0 : index
    %c2 = arith.constant 2 : index
    %c0_18 = arith.constant 0 : index
    %17 = vector.load %arg8[%c0_17, %c2, %c0_18] : memref<1x4x256xf32, #tpu.memory_space<vmem>>, vector<1x2x256xf32>
    %18 = vector.shape_cast %17 : vector<1x2x256xf32> to vector<2x256xf32>
    %19 = vector.shape_cast %16 : vector<2x256xf32> to vector<1x2x256xf32>
    tpu.vector_store %arg8[%c0_17, %c2, %c0_18], %19 {strides = array<i32>} : memref<1x4x256xf32, #tpu.memory_space<vmem>>, vector<1x2x256xf32>,
    return
  }
  func.func @transform_0(%arg0: i32, %arg1: i32) -> (i32, i32, i32) {
    %c0_i32 = arith.constant 0 : i32
    %c0_i32_0 = arith.constant 0 : i32
    return %arg0, %c0_i32, %arg1 : i32, i32, i32
  }
  func.func @transform_1(%arg0: i32, %arg1: i32) -> (i32, i32, i32) {
    %c0_i32 = arith.constant 0 : i32
    %c0_i32_0 = arith.constant 0 : i32
    return %arg0, %c0_i32, %arg1 : i32, i32, i32
  }
  func.func @transform_2(%arg0: i32, %arg1: i32) -> (i32, i32) {
    %c0_i32 = arith.constant 0 : i32
    %c0_i32_0 = arith.constant 0 : i32
    %c0_i32_1 = arith.constant 0 : i32
    return %c0_i32, %c0_i32_0 : i32, i32
  }
  func.func @transform_3(%arg0: i32, %arg1: i32) -> (i32, i32) {
    %c0_i32 = arith.constant 0 : i32
    %c0_i32_0 = arith.constant 0 : i32
    %c0_i32_1 = arith.constant 0 : i32
    return %c0_i32, %c0_i32_0 : i32, i32
  }
  func.func @transform_4(%arg0: i32, %arg1: i32) -> (i32, i32) {
    %c0_i32 = arith.constant 0 : i32
    %c0_i32_0 = arith.constant 0 : i32
    %c0_i32_1 = arith.constant 0 : i32
    return %c0_i32, %c0_i32_0 : i32, i32
  }
  func.func @transform_5(%arg0: i32, %arg1: i32) -> (i32, i32) {
    %c0_i32 = arith.constant 0 : i32
    %c0_i32_0 = arith.constant 0 : i32
    %c0_i32_1 = arith.constant 0 : i32
    return %c0_i32, %c0_i32_0 : i32, i32
  }
  func.func @transform_6(%arg0: i32, %arg1: i32) -> (i32, i32, i32) {
    %c0_i32 = arith.constant 0 : i32
    %c0_i32_0 = arith.constant 0 : i32
    return %arg0, %c0_i32, %arg1 : i32, i32, i32
  }
}

</mosaic_0001>

<llo_original>
// kernel: tpu_custom_call.1
$region0: #{tpu_custom_call.1}
  #allocation0 [shape = 'u32[]', space=smem, size = 0x4, offset = 0x4, fixed_abs, tag = 'smem constant byte address 0x4 - core index']
  #allocation1 [shape = 'u32[144,128]{1,0:T(1,128)}', space=vmem, size = 0x12000, scoped, tag = 'internal scratch']
  %s0 = inlined_call_operand.hbm [shape: f32[2,4,256], index: 0, kind: input, shape index: {}]
  %s1 = inlined_call_operand.hbm [shape: f32[2,4,256], index: 1, kind: input, shape index: {}]
  %s2 = inlined_call_operand.vmem [shape: f32[2,4], index: 2, kind: input, shape index: {}]
  %s3 = inlined_call_operand.vmem [shape: f32[2,1], index: 3, kind: input, shape index: {}]
  %s4 = inlined_call_operand.vmem [shape: f32[2,4], index: 4, kind: input, shape index: {}]
  %s5 = inlined_call_operand.vmem [shape: f32[2,1], index: 5, kind: input, shape index: {}]
  %s6 = inlined_call_operand.hbm [shape: f32[2,4,256], index: 6, kind: output, shape index: {}]
  %s7 = sld [smem:[#allocation0]]
  $region65: #{tpu_custom_call.1} parent=0
    _
  %s9 = ssub.s32 1, %s7
  %s10 = scalar_select 0, %s9, %s7
  $region1: #{tpu_custom_call.1} parent=0
    #allocation2 [shape = 'u8[8192]{0}', space=vmem, size = 0x2000, scoped, tag = 'input window, operand 0']
    #allocation3 [shape = 's32[2]{0}', space=sflag, size = 0x8, scoped, tag = 'scoped memory for tpu_custom_call.1']
    #allocation4 [shape = 's32[2]{0}', space=sflag, size = 0x8, scoped, tag = 'scoped memory for tpu_custom_call.1']
    #allocation5 [shape = 'u8[8192]{0}', space=vmem, size = 0x2000, scoped, tag = 'input window, operand 1']
    #allocation6 [shape = 's32[2]{0}', space=sflag, size = 0x8, scoped, tag = 'scoped memory for tpu_custom_call.1']
    #allocation7 [shape = 'u8[8192]{0}', space=vmem, size = 0x2000, scoped, tag = 'output window, operand 0']
    %11 = vsyncpa [#allocation3], 0
    %s12 = scalar_lea.sflag [#allocation3], 1
    %13 = vsyncpa %s12, 0
    %14 = vsyncpa [#allocation6], 0
    %s15 = scalar_lea.sflag [#allocation6], 1
    %16 = vsyncpa %s15, 0
    %17 = vsyncpa [#allocation4], 0
    %s18 = scalar_lea.sflag [#allocation4], 1
    %19 = vsyncpa %s18, 0
    loop: start=0, step=1, limit=4
    $region2: #{tpu_custom_call.1} parent=1 // loop_pre_header
      _
    $region3: #{tpu_custom_call.1} parent=1 // loop_header
      %s21 = sphi 0, %s25
      %p22 = scmp.ge.s32.totalorder %s21, 4
      %s28 = sphi 0, %s40
      %s29 = sphi 0, %s36
      %s30 = sphi 0, %s28
      %s31 = sphi 0, %s29
      %s32 = sphi 0, %s30
      %s33 = sphi 0, %s31
      %s45 = sphi 0, %s47
      %s48 = sphi 0, %s45
      %s49 = sphi 0, %s48
      %s65 = sphi 0, %s49
      %s73 = sphi 0, %s75
      %s76 = sphi 0, %s73
      %s77 = sphi 0, %s76
      %s93 = sphi 0, %s77
      %s97 = sphi 0, %s97
      %s99 = sphi 0, %s97
      %s100 = sphi 0, %s99
      %s114 = sphi 0, %s100
      %s118 = sphi 0, %s118
      %s120 = sphi 0, %s118
      %s121 = sphi 0, %s120
      %s135 = sphi 0, %s121
      %s139 = sphi 0, %s139
      %s141 = sphi 0, %s139
      %s142 = sphi 0, %s141
      %s156 = sphi 0, %s142
      %s160 = sphi 0, %s160
      %s162 = sphi 0, %s160
      %s163 = sphi 0, %s162
      %s177 = sphi 0, %s163
      %s185 = sphi 0, %s187
      %s188 = sphi 0, %s185
      %s189 = sphi 0, %s188
      %s205 = sphi 0, %s189
    $region4: #{tpu_custom_call.1} parent=1 // loop_header_branch
      %24 = sbr.rel (%p22) target = $region8
    $region5: #{tpu_custom_call.1} parent=1 // loop_body
      %s26 = ssub.s32 %s21, 1
      %s27 = ssub.s32 %s21, 2
      %s34 = sadd.s32 1, %s29
      %p35 = scmp.ge.s32.totalorder %s34, 1
      %s36 = scalar_select %p35, 0, %s34
      %s37 = sadd.s32 1, %s28
      %s38 = scalar_select %p35, %s37, %s28
      %p39 = scmp.ge.s32.totalorder %s38, 2
      %s40 = scalar_select %p39, 0, %s38
      %s41 = ssub.s32 %s28, %s40
      %s42 = ssub.s32 %s29, %s36
      %s43 = sor.u32 %s41, %s42
      %p44 = scmp.eq.s32.totalorder %s43, 0
      %s46 = sadd.s32 %s45, 1
      %s47 = scalar_select %p44, %s45, %s46
      %p50 = pneg %p44
      %p51 = scmp.eq.s32.totalorder %s21, 1
      %p52 = por %p50, %p51
      %p53 = scmp.ne.s32.totalorder %s45, %s48
      %p54 = scmp.eq.s32.totalorder %s21, 0
      %p55 = por %p53, %p54
      %p56 = scmp.ne.s32.totalorder %s45, %s48
      %p57 = scmp.eq.s32.totalorder %s26, 1
      %p58 = por %p56, %p57
      %p59 = scmp.ne.s32.totalorder %s48, %s49
      %p60 = scmp.eq.s32.totalorder %s26, 0
      %p61 = por %p59, %p60
      %p62 = scmp.ne.s32.totalorder %s48, %s49
      %p63 = scmp.eq.s32.totalorder %s27, 1
      %p64 = por %p62, %p63
      %p66 = scmp.ne.s32.totalorder %s49, %s65
      %p67 = scmp.eq.s32.totalorder %s27, 0
      %p68 = por %p66, %p67
      %s69 = ssub.s32 %s28, %s40
      %s70 = ssub.s32 %s29, %s36
      %s71 = sor.u32 %s69, %s70
      %p72 = scmp.eq.s32.totalorder %s71, 0
      %s74 = sadd.s32 %s73, 1
      %s75 = scalar_select %p72, %s73, %s74
      %p78 = pneg %p72
      %p79 = scmp.eq.s32.totalorder %s21, 1
      %p80 = por %p78, %p79
      %p81 = scmp.ne.s32.totalorder %s73, %s76
      %p82 = scmp.eq.s32.totalorder %s21, 0
      %p83 = por %p81, %p82
      %p84 = scmp.ne.s32.totalorder %s73, %s76
      %p85 = scmp.eq.s32.totalorder %s26, 1
      %p86 = por %p84, %p85
      %p87 = scmp.ne.s32.totalorder %s76, %s77
      %p88 = scmp.eq.s32.totalorder %s26, 0
      %p89 = por %p87, %p88
      %p90 = scmp.ne.s32.totalorder %s76, %s77
      %p91 = scmp.eq.s32.totalorder %s27, 1
      %p92 = por %p90, %p91
      %p94 = scmp.ne.s32.totalorder %s77, %s93
      %p95 = scmp.eq.s32.totalorder %s27, 0
      %p96 = por %p94, %p95
      %s98 = sadd.s32 %s97, 1
      %p101 = scmp.eq.s32.totalorder %s21, 1
      %p102 = scmp.ne.s32.totalorder %s97, %s99
      %p103 = scmp.eq.s32.totalorder %s21, 0
      %p104 = por %p102, %p103
      %p105 = scmp.ne.s32.totalorder %s97, %s99
      %p106 = scmp.eq.s32.totalorder %s26, 1
      %p107 = por %p105, %p106
      %p108 = scmp.ne.s32.totalorder %s99, %s100
      %p109 = scmp.eq.s32.totalorder %s26, 0
      %p110 = por %p108, %p109
      %p111 = scmp.ne.s32.totalorder %s99, %s100
      %p112 = scmp.eq.s32.totalorder %s27, 1
      %p113 = por %p111, %p112
      %p115 = scmp.ne.s32.totalorder %s100, %s114
      %p116 = scmp.eq.s32.totalorder %s27, 0
      %p117 = por %p115, %p116
      %s119 = sadd.s32 %s118, 1
      %p122 = scmp.eq.s32.totalorder %s21, 1
      %p123 = scmp.ne.s32.totalorder %s118, %s120
      %p124 = scmp.eq.s32.totalorder %s21, 0
      %p125 = por %p123, %p124
      %p126 = scmp.ne.s32.totalorder %s118, %s120
      %p127 = scmp.eq.s32.totalorder %s26, 1
      %p128 = por %p126, %p127
      %p129 = scmp.ne.s32.totalorder %s120, %s121
      %p130 = scmp.eq.s32.totalorder %s26, 0
      %p131 = por %p129, %p130
      %p132 = scmp.ne.s32.totalorder %s120, %s121
      %p133 = scmp.eq.s32.totalorder %s27, 1
      %p134 = por %p132, %p133
      %p136 = scmp.ne.s32.totalorder %s121, %s135
      %p137 = scmp.eq.s32.totalorder %s27, 0
      %p138 = por %p136, %p137
      %s140 = sadd.s32 %s139, 1
      %p143 = scmp.eq.s32.totalorder %s21, 1
      %p144 = scmp.ne.s32.totalorder %s139, %s141
      %p145 = scmp.eq.s32.totalorder %s21, 0
      %p146 = por %p144, %p145
      %p147 = scmp.ne.s32.totalorder %s139, %s141
      %p148 = scmp.eq.s32.totalorder %s26, 1
      %p149 = por %p147, %p148
      %p150 = scmp.ne.s32.totalorder %s141, %s142
      %p151 = scmp.eq.s32.totalorder %s26, 0
      %p152 = por %p150, %p151
      %p153 = scmp.ne.s32.totalorder %s141, %s142
      %p154 = scmp.eq.s32.totalorder %s27, 1
      %p155 = por %p153, %p154
      %p157 = scmp.ne.s32.totalorder %s142, %s156
      %p158 = scmp.eq.s32.totalorder %s27, 0
      %p159 = por %p157, %p158
      %s161 = sadd.s32 %s160, 1
      %p164 = scmp.eq.s32.totalorder %s21, 1
      %p165 = scmp.ne.s32.totalorder %s160, %s162
      %p166 = scmp.eq.s32.totalorder %s21, 0
      %p167 = por %p165, %p166
      %p168 = scmp.ne.s32.totalorder %s160, %s162
      %p169 = scmp.eq.s32.totalorder %s26, 1
      %p170 = por %p168, %p169
      %p171 = scmp.ne.s32.totalorder %s162, %s163
      %p172 = scmp.eq.s32.totalorder %s26, 0
      %p173 = por %p171, %p172
      %p174 = scmp.ne.s32.totalorder %s162, %s163
      %p175 = scmp.eq.s32.totalorder %s27, 1
      %p176 = por %p174, %p175
      %p178 = scmp.ne.s32.totalorder %s163, %s177
      %p179 = scmp.eq.s32.totalorder %s27, 0
      %p180 = por %p178, %p179
      %s181 = ssub.s32 %s28, %s40
      %s182 = ssub.s32 %s29, %s36
      %s183 = sor.u32 %s181, %s182
      %p184 = scmp.eq.s32.totalorder %s183, 0
      %s186 = sadd.s32 %s185, 1
      %s187 = scalar_select %p184, %s185, %s186
      %p190 = pneg %p184
      %p191 = scmp.eq.s32.totalorder %s21, 1
      %p192 = por %p190, %p191
      %p193 = scmp.ne.s32.totalorder %s185, %s188
      %p194 = scmp.eq.s32.totalorder %s21, 0
      %p195 = por %p193, %p194
      %p196 = scmp.ne.s32.totalorder %s185, %s188
      %p197 = scmp.eq.s32.totalorder %s26, 1
      %p198 = por %p196, %p197
      %p199 = scmp.ne.s32.totalorder %s188, %s189
      %p200 = scmp.eq.s32.totalorder %s26, 0
      %p201 = por %p199, %p200
      %p202 = scmp.ne.s32.totalorder %s188, %s189
      %p203 = scmp.eq.s32.totalorder %s27, 1
      %p204 = por %p202, %p203
      %p206 = scmp.ne.s32.totalorder %s189, %s205
      %p207 = scmp.eq.s32.totalorder %s27, 0
      %p208 = por %p206, %p207
      %p209 = scmp.le.s32.totalorder 1, %s21
      %p210 = scmp.lt.s32.totalorder %s21, 3
      %p211 = pnand %p209, %p210
      %p212 = pneg %p211
      // Predicated region
      $region9: #{tpu_custom_call.1} parent=5 // pred_check
        _
      $region10: #{tpu_custom_call.1} parent=5 // pred_check_branch
        %214 = sbr.rel (%p211) target = $region12
      $region11: #{tpu_custom_call.1} parent=5 // pred_region
        %s215 = ssub.s32 %s21, 1
        // Predicated region
        $region13: #{tpu_custom_call.1} parent=11 // pred_check
          %p216 = pneg %p110
        $region14: #{tpu_custom_call.1} parent=11 // pred_check_branch
          %218 = sbr.rel (%p216) target = $region16
        $region15: #{tpu_custom_call.1} parent=11 // pred_region
          _
        $region16: #{tpu_custom_call.1} parent=11 // pred_fallthru
          _
        // Predicated region
        $region17: #{tpu_custom_call.1} parent=11 // pred_check
          %p219 = pneg %p131
        $region18: #{tpu_custom_call.1} parent=11 // pred_check_branch
          %221 = sbr.rel (%p219) target = $region20
        $region19: #{tpu_custom_call.1} parent=11 // pred_region
          _
        $region20: #{tpu_custom_call.1} parent=11 // pred_fallthru
          _
        // Predicated region
        $region21: #{tpu_custom_call.1} parent=11 // pred_check
          %p222 = pneg %p152
        $region22: #{tpu_custom_call.1} parent=11 // pred_check_branch
          %224 = sbr.rel (%p222) target = $region24
        $region23: #{tpu_custom_call.1} parent=11 // pred_region
          _
        $region24: #{tpu_custom_call.1} parent=11 // pred_fallthru
          _
        // Predicated region
        $region25: #{tpu_custom_call.1} parent=11 // pred_check
          %p225 = pneg %p173
        $region26: #{tpu_custom_call.1} parent=11 // pred_check_branch
          %227 = sbr.rel (%p225) target = $region28
        $region27: #{tpu_custom_call.1} parent=11 // pred_region
          _
        $region28: #{tpu_custom_call.1} parent=11 // pred_fallthru
          _
      $region12: #{tpu_custom_call.1} parent=5 // pred_fallthru
        _
      %p228 = scmp.lt.s32.totalorder %s21, 2
      // Predicated region
      $region29: #{tpu_custom_call.1} parent=5 // pred_check
        %p229 = pneg %p228
      $region30: #{tpu_custom_call.1} parent=5 // pred_check_branch
        %231 = sbr.rel (%p229) target = $region32
      $region31: #{tpu_custom_call.1} parent=5 // pred_region
        // Predicated region
        $region33: #{tpu_custom_call.1} parent=31 // pred_check
          %p232 = pneg %p55
        $region34: #{tpu_custom_call.1} parent=31 // pred_check_branch
          %234 = sbr.rel (%p232) target = $region36
        $region35: #{tpu_custom_call.1} parent=31 // pred_region
          %s235 = sand.u32 %s45, 1
          %s236 = scalar_lea.sflag [#allocation3], %s235
          %s237 = sand.u32 %s45, 1
          %s238 = smul.addr %s237, 8
          %s239 = scalar_lea.vmem [#allocation2], %s238
          %s240 = smul.u32 2, %s29
          %s242 = ssub.s32 128, 128
          %243 = vsyncadd %s236, %s242
          %s244 = smul.addr %s28, 2
          %s245 = sadd.s32 %s240, %s244
          %s246 = smul.addr %s245, 64
          %s247 = scalar_lea.hbm %s0, %s246
          %s249 = sshll.u32 %s239, 4
          %s250 = int_to_ptr.vmem [resolvable:$true] %s249
          %252 = dma.hbm_to_vmem [thread:$0]  %s247, 128, %s250, %s236
        $region36: #{tpu_custom_call.1} parent=31 // pred_fallthru
          _
        // Predicated region
        $region37: #{tpu_custom_call.1} parent=31 // pred_check
          %p253 = pneg %p83
        $region38: #{tpu_custom_call.1} parent=31 // pred_check_branch
          %255 = sbr.rel (%p253) target = $region40
        $region39: #{tpu_custom_call.1} parent=31 // pred_region
          %s256 = sand.u32 %s73, 1
          %s257 = scalar_lea.sflag [#allocation6], %s256
          %s258 = sand.u32 %s73, 1
          %s259 = smul.addr %s258, 8
          %s260 = scalar_lea.vmem [#allocation5], %s259
          %s261 = smul.u32 2, %s29
          %s263 = ssub.s32 128, 128
          %264 = vsyncadd %s257, %s263
          %s265 = smul.addr %s28, 2
          %s266 = sadd.s32 %s261, %s265
          %s267 = smul.addr %s266, 64
          %s268 = scalar_lea.hbm %s1, %s267
          %s270 = sshll.u32 %s260, 4
          %s271 = int_to_ptr.vmem [resolvable:$true] %s270
          %273 = dma.hbm_to_vmem [thread:$0]  %s268, 128, %s271, %s257
        $region40: #{tpu_custom_call.1} parent=31 // pred_fallthru
          _
      $region32: #{tpu_custom_call.1} parent=5 // pred_fallthru
        _
      %p274 = scmp.le.s32.totalorder 1, %s21
      %p275 = scmp.lt.s32.totalorder %s21, 3
      %p276 = pnand %p274, %p275
      %p277 = pneg %p276
      // Predicated region
      $region41: #{tpu_custom_call.1} parent=5 // pred_check
        _
      $region42: #{tpu_custom_call.1} parent=5 // pred_check_branch
        %279 = sbr.rel (%p276) target = $region44
      $region43: #{tpu_custom_call.1} parent=5 // pred_region
        %s280 = ssub.s32 %s21, 1
        %s281 = sand.u32 %s48, 1
        %s282 = scalar_lea.sflag [#allocation3], %s281
        %s283 = sand.u32 %s48, 1
        %s284 = smul.addr %s283, 8
        %s285 = scalar_lea.vmem [#allocation2], %s284
        // Predicated region
        $region45: #{tpu_custom_call.1} parent=43 // pred_check
          %p286 = pneg %p61
        $region46: #{tpu_custom_call.1} parent=43 // pred_check_branch
          %288 = sbr.rel (%p286) target = $region48
        $region47: #{tpu_custom_call.1} parent=43 // pred_region
          %289 = dma.done %s282, 128
        $region48: #{tpu_custom_call.1} parent=43 // pred_fallthru
          _
        %s290 = sand.u32 %s76, 1
        %s291 = scalar_lea.sflag [#allocation6], %s290
        %s292 = sand.u32 %s76, 1
        %s293 = smul.addr %s292, 8
        %s294 = scalar_lea.vmem [#allocation5], %s293
        // Predicated region
        $region49: #{tpu_custom_call.1} parent=43 // pred_check
          %p295 = pneg %p89
        $region50: #{tpu_custom_call.1} parent=43 // pred_check_branch
          %297 = sbr.rel (%p295) target = $region52
        $region51: #{tpu_custom_call.1} parent=43 // pred_region
          %298 = dma.done %s291, 128
        $region52: #{tpu_custom_call.1} parent=43 // pred_fallthru
          _
        %s299 = sand.u32 %s48, 1
        %s300 = scalar_lea.sflag [#allocation3], %s299
        %s301 = sand.u32 %s48, 1
        %s302 = smul.addr %s301, 8
        %s303 = scalar_lea.vmem [#allocation2], %s302
        %p304 = pneg %p61
        %p305 = pneg %p58
        %s306 = sand.u32 %s76, 1
        %s307 = scalar_lea.sflag [#allocation6], %s306
        %s308 = sand.u32 %s76, 1
        %s309 = smul.addr %s308, 8
        %s310 = scalar_lea.vmem [#allocation5], %s309
        %p311 = pneg %p89
        %p312 = pneg %p86
        %p313 = pneg %p110
        %p314 = pneg %p107
        %p315 = pneg %p131
        %p316 = pneg %p128
        %p317 = pneg %p152
        %p318 = pneg %p149
        %p319 = pneg %p173
        %p320 = pneg %p170
        %p321 = pneg %p201
        %p322 = pneg %p198
        %s323 = sand.u32 %s188, 1
        %s324 = scalar_lea.sflag [#allocation4], %s323
        %s325 = sand.u32 %s188, 1
        %s326 = smul.addr %s325, 8
        %s327 = scalar_lea.vmem [#allocation7], %s326
        %s328 = smul.u32 2, %s31
        %s329 = smul.u32 2, %s31
        %s330 = smul.u32 2, %s31
        %v331 = vld [vmem:[%s2] sm:$0x3]
        %v332 = vld [vmem:[%s285] sm:$0xff]
        %v333 = vld [vmem:[%s3] sm:$0x3]
        %335 = vset.pattern.permute.xlu0 0
        %336 = vperm.xlu0 %335, %v333
        %v337 = vpop.permute.xlu0 %336
        %v340 = vcombine.high %v332, %v332
        %vm341 = vcmask 31744
        %v343 = vsel %vm341, %v331, 0
        %vm345 = vcmask 1043456
        %v346 = vsel %vm345, %v332, 0
        %v348 = vsel %vm345, %v340, 0
        %350 = vmatprep.subr.mxu0 0.0
        %351 = vmatpush1.msra.mxu0 0.0
        %352 = vmatprep.subr.mxu0 0.0
        %353 = vmatpush1.msra.mxu0 0.0
        %354 = vmatprep.subr.mxu0 0.0
        %355 = vmatpush1.msra.mxu0 0.0
        %356 = vmatprep.subr.mxu0 0.0
        %357 = vmatpush1.msra.mxu0 0.0
        %358 = vmatprep.subr.mxu0 0.0
        %359 = vmatpush1.msra.mxu0 0.0
        %360 = vmatprep.subr.mxu0 0.0
        %361 = vmatpush1.msra.mxu0 0.0
        %362 = vmatprep.subr.mxu0 0.0
        %363 = vmatpush1.msra.mxu0 0.0
        %364 = vmatprep.subr.mxu0 0.0
        %365 = vmatpush1.msra.mxu0 0.0
        %366 = vmatprep.subr.mxu0 0.0
        %367 = vmatpush1.msra.mxu0 0.0
        %368 = vmatprep.subr.mxu0 0.0
        %369 = vmatpush1.msra.mxu0 0.0
        %370 = vmatprep.subr.mxu0 0.0
        %371 = vmatpush1.msra.mxu0 0.0
        %372 = vmatprep.subr.mxu0 0.0
        %373 = vmatpush1.msra.mxu0 0.0
        %374 = vmatprep.subr.mxu0 0.0
        %375 = vmatpush1.msra.mxu0 0.0
        %376 = vmatprep.subr.mxu0 0.0
        %377 = vmatpush1.msra.mxu0 0.0
        %378 = vmatprep.subr.mxu0 0.0
        %379 = vmatpush1.msra.mxu0 0.0
        %380 = vmatprep.subr.mxu0 %v348
        %381 = vmatpush1.msra.mxu0 %v346
        %382 = vmatprep.subr.mxu0 0.0
        %383 = vmatpush2.msra.mxu0 0.0
        %384 = vmatprep.subr.mxu0 0.0
        %385 = vmatpush2.msra.mxu0 0.0
        %386 = vmatprep.subr.mxu0 0.0
        %387 = vmatpush2.msra.mxu0 0.0
        %388 = vmatprep.subr.mxu0 0.0
        %389 = vmatpush2.msra.mxu0 0.0
        %390 = vmatprep.subr.mxu0 0.0
        %391 = vmatpush2.msra.mxu0 0.0
        %392 = vmatprep.subr.mxu0 0.0
        %393 = vmatpush2.msra.mxu0 0.0
        %394 = vmatprep.subr.mxu0 0.0
        %395 = vmatpush2.msra.mxu0 0.0
        %396 = vmatprep.subr.mxu0 0.0
        %397 = vmatpush2.msra.mxu0 0.0
        %398 = vmatprep.subr.mxu0 0.0
        %399 = vmatpush2.msra.mxu0 0.0
        %400 = vmatprep.subr.mxu0 0.0
        %401 = vmatpush2.msra.mxu0 0.0
        %402 = vmatprep.subr.mxu0 0.0
        %403 = vmatpush2.msra.mxu0 0.0
        %404 = vmatprep.subr.mxu0 0.0
        %405 = vmatpush2.msra.mxu0 0.0
        %406 = vmatprep.subr.mxu0 0.0
        %407 = vmatpush2.msra.mxu0 0.0
        %408 = vmatprep.subr.mxu0 0.0
        %409 = vmatpush2.msra.mxu0 0.0
        %410 = vmatprep.subr.mxu0 0.0
        %411 = vmatpush2.msra.mxu0 0.0
        %412 = vmatprep.subr.mxu0 0.0
        %413 = vmatpush2.msra.mxu0 0.0
        %414 = vmatprep.mubr.f32.mxu0 0.0
        %415 = vmatmul.mubr.f32.gmra.mxu0 %v343
        %v416 = vpop.f32.mrf.mxu0
        %v417 = vadd.f32 %v337, %v416
        %v418 = vpop.f32.mrf.mxu0
        %v419 = vadd.f32 %v337, %v418
        %420 = vdwg.mxu0
        %v423 = vcombine.low %v417, %v419
        %425 = vst [vmem:[%s327] sm:$0x33] %v423
        %v426 = vld [vmem:[%s4] sm:$0x3]
        %v427 = vld [vmem:[%s294] sm:$0xff]
        %v428 = vld [vmem:[%s5] sm:$0x3]
        %430 = vset.pattern.permute.xlu0 0
        %431 = vperm.xlu0 %430, %v428
        %v432 = vpop.permute.xlu0 %431
        %v435 = vcombine.high %v427, %v427
        %v437 = vsel %vm341, %v426, 0
        %v439 = vsel %vm345, %v427, 0
        %v441 = vsel %vm345, %v435, 0
        %443 = vmatprep.subr.mxu0 0.0
        %444 = vmatpush1.msra.mxu0 0.0
        %445 = vmatprep.subr.mxu0 0.0
        %446 = vmatpush1.msra.mxu0 0.0
        %447 = vmatprep.subr.mxu0 0.0
        %448 = vmatpush1.msra.mxu0 0.0
        %449 = vmatprep.subr.mxu0 0.0
        %450 = vmatpush1.msra.mxu0 0.0
        %451 = vmatprep.subr.mxu0 0.0
        %452 = vmatpush1.msra.mxu0 0.0
        %453 = vmatprep.subr.mxu0 0.0
        %454 = vmatpush1.msra.mxu0 0.0
        %455 = vmatprep.subr.mxu0 0.0
        %456 = vmatpush1.msra.mxu0 0.0
        %457 = vmatprep.subr.mxu0 0.0
        %458 = vmatpush1.msra.mxu0 0.0
        %459 = vmatprep.subr.mxu0 0.0
        %460 = vmatpush1.msra.mxu0 0.0
        %461 = vmatprep.subr.mxu0 0.0
        %462 = vmatpush1.msra.mxu0 0.0
        %463 = vmatprep.subr.mxu0 0.0
        %464 = vmatpush1.msra.mxu0 0.0
        %465 = vmatprep.subr.mxu0 0.0
        %466 = vmatpush1.msra.mxu0 0.0
        %467 = vmatprep.subr.mxu0 0.0
        %468 = vmatpush1.msra.mxu0 0.0
        %469 = vmatprep.subr.mxu0 0.0
        %470 = vmatpush1.msra.mxu0 0.0
        %471 = vmatprep.subr.mxu0 0.0
        %472 = vmatpush1.msra.mxu0 0.0
        %473 = vmatprep.subr.mxu0 %v441
        %474 = vmatpush1.msra.mxu0 %v439
        %475 = vmatprep.subr.mxu0 0.0
        %476 = vmatpush2.msra.mxu0 0.0
        %477 = vmatprep.subr.mxu0 0.0
        %478 = vmatpush2.msra.mxu0 0.0
        %479 = vmatprep.subr.mxu0 0.0
        %480 = vmatpush2.msra.mxu0 0.0
        %481 = vmatprep.subr.mxu0 0.0
        %482 = vmatpush2.msra.mxu0 0.0
        %483 = vmatprep.subr.mxu0 0.0
        %484 = vmatpush2.msra.mxu0 0.0
        %485 = vmatprep.subr.mxu0 0.0
        %486 = vmatpush2.msra.mxu0 0.0
        %487 = vmatprep.subr.mxu0 0.0
        %488 = vmatpush2.msra.mxu0 0.0
        %489 = vmatprep.subr.mxu0 0.0
        %490 = vmatpush2.msra.mxu0 0.0
        %491 = vmatprep.subr.mxu0 0.0
        %492 = vmatpush2.msra.mxu0 0.0
        %493 = vmatprep.subr.mxu0 0.0
        %494 = vmatpush2.msra.mxu0 0.0
        %495 = vmatprep.subr.mxu0 0.0
        %496 = vmatpush2.msra.mxu0 0.0
        %497 = vmatprep.subr.mxu0 0.0
        %498 = vmatpush2.msra.mxu0 0.0
        %499 = vmatprep.subr.mxu0 0.0
        %500 = vmatpush2.msra.mxu0 0.0
        %501 = vmatprep.subr.mxu0 0.0
        %502 = vmatpush2.msra.mxu0 0.0
        %503 = vmatprep.subr.mxu0 0.0
        %504 = vmatpush2.msra.mxu0 0.0
        %505 = vmatprep.subr.mxu0 0.0
        %506 = vmatpush2.msra.mxu0 0.0
        %507 = vmatprep.mubr.f32.mxu0 0.0
        %508 = vmatmul.mubr.f32.gmra.mxu0 %v437
        %v509 = vpop.f32.mrf.mxu0
        %v510 = vadd.f32 %v432, %v509
        %v511 = vpop.f32.mrf.mxu0
        %v512 = vadd.f32 %v432, %v511
        %513 = vdwg.mxu0
        %v516 = vcombine.low %v510, %v512
        %v517 = vrot.slane %v516, 6
        %519 = vst [vmem:[%s327] sm:$0xcc] %v517
        %s520 = sand.u32 %s188, 1
        %s521 = scalar_lea.sflag [#allocation4], %s520
        %s522 = sand.u32 %s188, 1
        %s523 = smul.addr %s522, 8
        %s524 = scalar_lea.vmem [#allocation7], %s523
        // Predicated region
        $region53: #{tpu_custom_call.1} parent=43 // pred_check
          %p525 = pneg %p198
        $region54: #{tpu_custom_call.1} parent=43 // pred_check_branch
          %527 = sbr.rel (%p525) target = $region56
        $region55: #{tpu_custom_call.1} parent=43 // pred_region
          %s528 = smul.u32 2, %s31
          %s530 = ssub.s32 128, 128
          %531 = vsyncadd %s521, %s530
          %s532 = smul.addr %s30, 2
          %s533 = sadd.s32 %s528, %s532
          %s534 = smul.addr %s533, 64
          %s535 = scalar_lea.hbm %s6, %s534
          %s537 = sshll.u32 %s524, 4
          %s538 = int_to_ptr.vmem [resolvable:$true] %s537
          %540 = dma.vmem_to_hbm [thread:$0]  %s538, 128, %s535, %s521
        $region56: #{tpu_custom_call.1} parent=43 // pred_fallthru
          _
      $region44: #{tpu_custom_call.1} parent=5 // pred_fallthru
        _
      %p541 = scmp.le.s32.totalorder 2, %s21
      // Predicated region
      $region57: #{tpu_custom_call.1} parent=5 // pred_check
        %p542 = pneg %p541
      $region58: #{tpu_custom_call.1} parent=5 // pred_check_branch
        %544 = sbr.rel (%p542) target = $region60
      $region59: #{tpu_custom_call.1} parent=5 // pred_region
        %s545 = ssub.s32 %s21, 2
        // Predicated region
        $region61: #{tpu_custom_call.1} parent=59 // pred_check
          %p546 = pneg %p204
        $region62: #{tpu_custom_call.1} parent=59 // pred_check_branch
          %548 = sbr.rel (%p546) target = $region64
        $region63: #{tpu_custom_call.1} parent=59 // pred_region
          %s549 = sand.u32 %s189, 1
          %s550 = scalar_lea.sflag [#allocation4], %s549
          %s551 = sand.u32 %s189, 1
          %s552 = smul.addr %s551, 8
          %s553 = scalar_lea.vmem [#allocation7], %s552
          %554 = dma.done %s550, 128
        $region64: #{tpu_custom_call.1} parent=59 // pred_fallthru
          _
      $region60: #{tpu_custom_call.1} parent=5 // pred_fallthru
        _
    $region6: #{tpu_custom_call.1} parent=1 // loop_footer
      %s25 = sadd.s32 1, %s21
    $region7: #{tpu_custom_call.1} parent=1 // loop_footer_branch
      %20 = sbr.rel target = $region3
    $region8: #{tpu_custom_call.1} parent=1 // loop_exit
      _
    %555 = vsyncpa [#allocation3], 1
    %s556 = scalar_lea.sflag [#allocation3], 1
    %557 = vsyncpa %s556, 1
    %558 = vsyncpa [#allocation6], 1
    %s559 = scalar_lea.sflag [#allocation6], 1
    %560 = vsyncpa %s559, 1
    %561 = vsyncpa [#allocation4], 1
    %s562 = scalar_lea.sflag [#allocation4], 1
    %563 = vsyncpa %s562, 1

</llo_original>
